<compile_context>
chip_gen: v7x
topology: tpu7x:2x2x1
jax: 0.10.0
libtpu: 0.0.40
codegen_flags: <defaults>
</compile_context>

<pallas_src>
import functools

import jax
import jax.numpy as jnp
from jax.experimental import pallas as pl
from jax.experimental.pallas import tpu as pltpu


# ---------------------------------------------------------------------------
# Kernels
# ---------------------------------------------------------------------------
def _partial_product(x_ref, w1_ref, b1_ref, w2_ref):
    """relu(x @ W1_chunk + b1_chunk) @ W2_chunk with f32 MXU accumulation."""
    x = x_ref[...].astype(jnp.bfloat16)                    # cast in-kernel (no wrapper pass)
    h = jnp.dot(x, w1_ref[...], preferred_element_type=jnp.float32)
    h = jnp.maximum(h + b1_ref[...], 0.0)
    # TODO(synk): training-mode dropout (pltpu.prng_random_bits mask) omitted;
    # eval-mode dropout is the identity, matching module.eval() semantics.
    return jnp.dot(h.astype(jnp.bfloat16), w2_ref[...],
                   preferred_element_type=jnp.float32)


def _ffn_kernel_f32_out(x_ref, w1_ref, b1_ref, w2_ref, b2_ref, o_ref):
    """f32 output: accumulate straight into the k-resident output block."""
    k = pl.program_id(1)
    y = _partial_product(x_ref, w1_ref, b1_ref, w2_ref)

    @pl.when(k == 0)
    def _():
        o_ref[...] = y + b2_ref[...]          # init with b2; no zero-then-add pass

    @pl.when(k > 0)
    def _():
        o_ref[...] += y


def _ffn_kernel_acc(x_ref, w1_ref, b1_ref, w2_ref, b2_ref, o_ref, acc_ref):
    """Non-f32 output: f32 VMEM accumulator, cast on the last reduction step."""
    k = pl.program_id(1)
    y = _partial_product(x_ref, w1_ref, b1_ref, w2_ref)

    @pl.when(k == 0)
    def _():
        acc_ref[...] = y + b2_ref[...]

    @pl.when(k > 0)
    def _():
        acc_ref[...] += y

    @pl.when(k == pl.num_programs(1) - 1)
    def _():
        o_ref[...] = acc_ref[...].astype(o_ref.dtype)


# ---------------------------------------------------------------------------
# Hardware queries (trace-time; safe fallbacks)
# ---------------------------------------------------------------------------
def _vmem_capacity_bytes():
    try:
        cap = int(pltpu.get_tpu_info().vmem_capacity_bytes)
        if cap > 0:
            return cap
    except Exception:
        pass
    return 64 * 1024 * 1024            # conservative fallback (v7x per-core VMEM)


def _num_tensorcores():
    try:
        info = pltpu.get_tpu_info()
        for attr in ("num_tensorcores", "tensorcore_count",
                     "num_cores_per_chip", "cores_per_chip"):
            v = getattr(info, attr, None)
            if isinstance(v, int) and v > 1:
                return v
    except Exception:
        pass
    return 1


# ---------------------------------------------------------------------------
# Wrapper
# ---------------------------------------------------------------------------
@functools.partial(jax.jit, static_argnames=("tile_m", "tile_ff"))
def position_wise_feed_forward(x, w1, b1, w2, b2, *, tile_m=None, tile_ff=None):
    """FFN forward.  x: [batch, seq, d_model]; PyTorch nn.Linear layouts:
    w1: [d_ff, d_model], b1: [d_ff], w2: [d_model, d_ff], b2: [d_model]."""
    batch, seq, d_model = x.shape
    d_ff = w1.shape[0]
    n = batch * seq

    out_dtype = x.dtype
    f32_out = (out_dtype == jnp.float32)
    x_isize = jnp.dtype(x.dtype).itemsize
    o_isize = jnp.dtype(out_dtype).itemsize

    cap = _vmem_capacity_bytes()
    budget = int(cap * 0.70)           # leave headroom for Mosaic internals

    # ---- d_ff tiling / weight residency -----------------------------------
    w_full = 2 * d_ff * d_model * 2                    # both mats, bf16, one copy
    resident = (tile_ff is None or tile_ff >= d_ff) and (2 * w_full <= budget // 2)
    if resident:
        tile_ff = d_ff                                 # constant block index -> one DMA total
        w_bytes = 2 * w_full                           # account for the idle 2nd buffer
    else:
        # Largest multiple-of-128 divisor of d_ff whose double-buffered blocks
        # use <= ~1/3 of the budget.  Never silently promote to full d_ff.
        req = tile_ff if tile_ff is not None else d_ff
        cand = (max(min(req, d_ff), 128) // 128) * 128
        tile_ff = 0
        while cand >= 128:
            if d_ff % cand == 0 and 8 * cand * d_model <= budget // 3:
                tile_ff = cand
                break
            cand -= 128
        if tile_ff == 0:
            tile_ff = 128 if d_ff % 128 == 0 else d_ff   # last resort
        w_bytes = 2 * 2 * tile_ff * d_model * 2          # 2 mats, double-buffered
    grid_k = d_ff // tile_ff

    # ---- row (tile_m) selection --------------------------------------------
    tile_m_pref = 1024 if cap >= 100 * 1024 * 1024 else 512   # v5e/v6e vs v7x
    if tile_m is not None:
        tile_m_pref = tile_m
    # Per-row VMEM bytes: x dbuf + out dbuf (+ f32 acc) + bf16 x copy + y temp
    # + h (f32 + bf16 copy) + one extra h-sized temp.
    per_row = (d_model * (2 * x_isize + 2 * o_isize + (0 if f32_out else 4) + 2 + 4)
               + tile_ff * 10)
    fixed = w_bytes + 4 * (2 * tile_ff + 2 * d_model) + (2 << 20)
    tile_m_fit = max((budget - fixed) // per_row, 8) // 8 * 8
    n_up = -(-n // 8) * 8
    tm = max(8, min(tile_m_pref, tile_m_fit, n_up)) // 8 * 8
    grid_m = -(-n // tm)

    # ---- derived VMEM limit (headroom, capped at 90% of capacity) ----------
    need = w_bytes + tm * per_row + 4 * (2 * tile_ff + 2 * d_model)
    vmem_limit = min(int(cap * 0.90), int(need) + (12 << 20))

    # ---- wrapper-side prep (transpose fused into the single bf16 cast pass) --
    x2 = x.reshape(n, d_model)                    # metadata only: no pad / cast
    w1t = w1.T.astype(jnp.bfloat16)               # (d_model, d_ff)
    w2t = w2.T.astype(jnp.bfloat16)               # (d_ff, d_model)
    b1_2 = b1.reshape(1, d_ff).astype(jnp.float32)
    b2_2 = b2.reshape(1, d_model).astype(jnp.float32)

    in_specs = [
        pl.BlockSpec((tm, d_model), lambda i, k: (i, 0)),      # x (k-invariant: one DMA / row tile)
        pl.BlockSpec((d_model, tile_ff), lambda i, k: (0, k)),  # W1.T chunk
        pl.BlockSpec((1, tile_ff), lambda i, k: (0, k)),        # b1 chunk
        pl.BlockSpec((tile_ff, d_model), lambda i, k: (k, 0)),  # W2.T chunk
        pl.BlockSpec((1, d_model), lambda i, k: (0, 0)),        # b2
    ]
    out_spec = pl.BlockSpec((tm, d_model), lambda i, k: (i, 0))

    if f32_out:
        kernel, scratch = _ffn_kernel_f32_out, []
    else:
        kernel = _ffn_kernel_acc
        scratch = [pltpu.VMEM((tm, d_model), jnp.float32)]

    row_sem = pltpu.PARALLEL
    if grid_m >= 2 and _num_tensorcores() > 1:
        row_sem = pltpu.CORE_PARALLEL      # shard row tiles across v7x's 2 TCs

    weight_reads = 1 if resident else grid_m       # honest HBM-traffic hint
    cost = pl.CostEstimate(
        flops=4 * n * d_model * d_ff,
        transcendentals=0,
        bytes_accessed=(n * d_model * x_isize
                        + weight_reads * 2 * d_ff * d_model * 2
                        + 4 * (d_ff + d_model)
                        + n * d_model * o_isize),
    )

    out = pl.pallas_call(
        kernel,
        out_shape=jax.ShapeDtypeStruct((n, d_model), out_dtype),
        grid_spec=pltpu.PrefetchScalarGridSpec(
            num_scalar_prefetch=0,
            grid=(grid_m, grid_k),
            in_specs=in_specs,
            out_specs=out_spec,
            scratch_shapes=scratch,
        ),
        compiler_params=pltpu.CompilerParams(
            dimension_semantics=(row_sem, pltpu.ARBITRARY),
            vmem_limit_bytes=int(vmem_limit)),
        cost_estimate=cost,
    )(x2, w1t, b1_2, w2t, b2_2)

    return out.reshape(batch, seq, d_model)


def _init_linear(key, out_features, in_features, dtype=jnp.float32):
    """Deterministic init mimicking nn.Linear default (U(+/- 1/sqrt(fan_in)))."""
    kw, kb = jax.random.split(key)
    bound = 1.0 / float(in_features) ** 0.5
    w = jax.random.uniform(kw, (out_features, in_features), dtype,
                           minval=-bound, maxval=bound)
    b = jax.random.uniform(kb, (out_features,), dtype,
                           minval=-bound, maxval=bound)
    return w, b


if __name__ == "__main__":
    # Small shapes; seq chosen so batch*seq is ragged w.r.t. the row tile,
    # exercising the masked partial-block path (no wrapper padding anymore).
    batch, seq, d_model, d_ff = 2, 201, 128, 256

    key = jax.random.PRNGKey(0)
    kx, k1, k2 = jax.random.split(key, 3)
    x = jax.random.normal(kx, (batch, seq, d_model), jnp.float32)
    w1, b1 = _init_linear(k1, d_ff, d_model)      # w_1: d_model -> d_ff
    w2, b2 = _init_linear(k2, d_model, d_ff)      # w_2: d_ff -> d_model

    # Pure-JAX f32 reference (eval mode: dropout = identity).  The kernel runs
    # the matmuls with bf16 inputs / f32 accumulation -> loosened tolerance.
    ref = jnp.maximum(x @ w1.T + b1, 0.0) @ w2.T + b2

    # 1) Default auto-tiling: weights fully resident in VMEM, f32 output
    #    accumulated directly in the output block (no scratch).
    out = position_wise_feed_forward(x, w1, b1, w2, b2)
    jax.block_until_ready(out)
    assert out.shape == (batch, seq, d_model) and out.dtype == x.dtype
    assert jnp.allclose(out, ref, atol=4e-2, rtol=4e-2), (
        float(jnp.max(jnp.abs(out - ref))))

    # 2) Forced d_ff streaming (2 reduction steps) + 2 row tiles: exercises the
    #    k-accumulation and multi-row-tile ragged-masking paths.
    out2 = position_wise_feed_forward(x, w1, b1, w2, b2, tile_m=256, tile_ff=128)
    jax.block_until_ready(out2)
    assert jnp.allclose(out2, ref, atol=4e-2, rtol=4e-2), (
        float(jnp.max(jnp.abs(out2 - ref))))

    # 3) bf16 activations/output: exercises the f32-scratch accumulator kernel.
    out3 = position_wise_feed_forward(x.astype(jnp.bfloat16), w1, b1, w2, b2,
                                      tile_ff=128)
    jax.block_until_ready(out3)
    assert out3.dtype == jnp.bfloat16
    assert jnp.allclose(out3.astype(jnp.float32), ref, atol=1e-1, rtol=1e-1), (
        float(jnp.max(jnp.abs(out3.astype(jnp.float32) - ref))))

    print("KERNEL_OK")
</pallas_src>

<mosaic_0001>
module attributes {stable_mosaic.version = 11 : i64} {
  func.func @_ffn_kernel_f32_out(%arg0: i32, %arg1: i32, %arg2: memref<408x128xf32, #tpu.memory_space<vmem>>, %arg3: memref<128x256xbf16, #tpu.memory_space<vmem>>, %arg4: memref<1x256xf32, #tpu.memory_space<vmem>>, %arg5: memref<256x128xbf16, #tpu.memory_space<vmem>>, %arg6: memref<1x128xf32, #tpu.memory_space<vmem>>, %arg7: memref<408x128xf32, #tpu.memory_space<vmem>>) attributes {dimension_semantics = [#tpu.dimension_semantics<parallel>, #tpu.dimension_semantics<arbitrary>], iteration_bounds = array<i64: 1, 1>, scalar_prefetch = 0 : i64, scratch_operands = 0 : i64, tpu.core_type = #tpu.core_type<tc>, window_params = [{transform_indices = @transform_0, window_bounds = array<i64: 408, 128>}, {transform_indices = @transform_1, window_bounds = array<i64: 128, 256>}, {transform_indices = @transform_2, window_bounds = array<i64: 1, 256>}, {transform_indices = @transform_3, window_bounds = array<i64: 256, 128>}, {pipeline_mode = #tpu.pipeline_mode<synchronous>, transform_indices = @transform_4, window_bounds = array<i64: 1, 128>}, {transform_indices = @transform_5, window_bounds = array<i64: 408, 128>}]} {
    %c0 = arith.constant 0 : index
    %c0_0 = arith.constant 0 : index
    %0 = vector.load %arg2[%c0, %c0_0] : memref<408x128xf32, #tpu.memory_space<vmem>>, vector<408x128xf32>
    %1 = arith.truncf %0 : vector<408x128xf32> to vector<408x128xbf16>
    %c0_1 = arith.constant 0 : index
    %c0_2 = arith.constant 0 : index
    %2 = vector.load %arg3[%c0_1, %c0_2] : memref<128x256xbf16, #tpu.memory_space<vmem>>, vector<128x256xbf16>
    %cst = arith.constant dense<0.000000e+00> : vector<408x256xf32>
    %3 = tpu.matmul %1, %2, %cst {dimension_numbers = #tpu.dot_dimension_numbers<[1], [0], [0], [1], [0, 0, 1, 1], [], []>} : vector<408x128xbf16>, vector<128x256xbf16>, vector<408x256xf32> -> vector<408x256xf32>
    %c0_3 = arith.constant 0 : index
    %c0_4 = arith.constant 0 : index
    %4 = vector.load %arg4[%c0_3, %c0_4] : memref<1x256xf32, #tpu.memory_space<vmem>>, vector<1x256xf32>
    %5 = vector.broadcast %4 : vector<1x256xf32> to vector<408x256xf32>
    %6 = arith.addf %3, %5 : vector<408x256xf32>
    %cst_5 = arith.constant 0.000000e+00 : f32
    %7 = vector.broadcast %cst_5 : f32 to vector<408x256xf32>
    %8 = arith.maximumf %6, %7 : vector<408x256xf32>
    %9 = arith.truncf %8 : vector<408x256xf32> to vector<408x256xbf16>
    %c0_6 = arith.constant 0 : index
    %c0_7 = arith.constant 0 : index
    %10 = vector.load %arg5[%c0_6, %c0_7] : memref<256x128xbf16, #tpu.memory_space<vmem>>, vector<256x128xbf16>
    %cst_8 = arith.constant dense<0.000000e+00> : vector<408x128xf32>
    %11 = tpu.matmul %9, %10, %cst_8 {dimension_numbers = #tpu.dot_dimension_numbers<[1], [0], [0], [1], [0, 0, 1, 1], [], []>} : vector<408x256xbf16>, vector<256x128xbf16>, vector<408x128xf32> -> vector<408x128xf32>
    %c0_i32 = arith.constant 0 : i32
    %12 = arith.cmpi eq, %arg1, %c0_i32 : i32
    %13 = arith.extui %12 : i1 to i32
    %c0_i32_9 = arith.constant 0 : i32
    %14 = arith.cmpi ne, %13, %c0_i32_9 : i32
    scf.if %14 {
      %c0_12 = arith.constant 0 : index
      %c0_13 = arith.constant 0 : index
      %18 = vector.load %arg6[%c0_12, %c0_13] : memref<1x128xf32, #tpu.memory_space<vmem>>, vector<1x128xf32>
      %19 = vector.broadcast %18 : vector<1x128xf32> to vector<408x128xf32>
      %20 = arith.addf %11, %19 : vector<408x128xf32>
      %c0_14 = arith.constant 0 : index
      %c0_15 = arith.constant 0 : index
      %21 = vector.load %arg7[%c0_14, %c0_15] : memref<408x128xf32, #tpu.memory_space<vmem>>, vector<408x128xf32>
      tpu.vector_store %arg7[%c0_14, %c0_15], %20 {strides = array<i32>} : memref<408x128xf32, #tpu.memory_space<vmem>>, vector<408x128xf32>,
    } else {
    }
    %c0_i32_10 = arith.constant 0 : i32
    %15 = arith.cmpi sgt, %arg1, %c0_i32_10 : i32
    %16 = arith.extui %15 : i1 to i32
    %c0_i32_11 = arith.constant 0 : i32
    %17 = arith.cmpi ne, %16, %c0_i32_11 : i32
    scf.if %17 {
      %c0_12 = arith.constant 0 : index
      %c0_13 = arith.constant 0 : index
      %18 = vector.load %arg7[%c0_12, %c0_13] : memref<408x128xf32, #tpu.memory_space<vmem>>, vector<408x128xf32>
      %19 = arith.addf %18, %11 : vector<408x128xf32>
      %c0_14 = arith.constant 0 : index
      %c0_15 = arith.constant 0 : index
      %20 = vector.load %arg7[%c0_14, %c0_15] : memref<408x128xf32, #tpu.memory_space<vmem>>, vector<408x128xf32>
      tpu.vector_store %arg7[%c0_14, %c0_15], %19 {strides = array<i32>} : memref<408x128xf32, #tpu.memory_space<vmem>>, vector<408x128xf32>,
    } else {
    }
    return
  }
  func.func @transform_0(%arg0: i32, %arg1: i32) -> (i32, i32) {
    %c0_i32 = arith.constant 0 : i32
    %c0_i32_0 = arith.constant 0 : i32
    return %arg0, %c0_i32 : i32, i32
  }
  func.func @transform_1(%arg0: i32, %arg1: i32) -> (i32, i32) {
    %c0_i32 = arith.constant 0 : i32
    %c0_i32_0 = arith.constant 0 : i32
    return %c0_i32, %arg1 : i32, i32
  }
  func.func @transform_2(%arg0: i32, %arg1: i32) -> (i32, i32) {
    %c0_i32 = arith.constant 0 : i32
    %c0_i32_0 = arith.constant 0 : i32
    return %c0_i32, %arg1 : i32, i32
  }
  func.func @transform_3(%arg0: i32, %arg1: i32) -> (i32, i32) {
    %c0_i32 = arith.constant 0 : i32
    %c0_i32_0 = arith.constant 0 : i32
    return %arg1, %c0_i32 : i32, i32
  }
  func.func @transform_4(%arg0: i32, %arg1: i32) -> (i32, i32) {
    %c0_i32 = arith.constant 0 : i32
    %c0_i32_0 = arith.constant 0 : i32
    %c0_i32_1 = arith.constant 0 : i32
    return %c0_i32, %c0_i32_0 : i32, i32
  }
  func.func @transform_5(%arg0: i32, %arg1: i32) -> (i32, i32) {
    %c0_i32 = arith.constant 0 : i32
    %c0_i32_0 = arith.constant 0 : i32
    return %arg0, %c0_i32 : i32, i32
  }
}

</mosaic_0001>

<llo_original>
// kernel: position_wise_feed_forward.1
$region0: #{position_wise_feed_forward.1}
  #allocation0 [shape = 'u32[]', space=smem, size = 0x4, offset = 0x4, fixed_abs, tag = 'smem constant byte address 0x4 - core index']
  #allocation1 [shape = 'u32[144,128]{1,0:T(1,128)}', space=vmem, size = 0x12000, scoped, tag = 'internal scratch']
  %s0 = inlined_call_operand.vmem [shape: f32[402,128], index: 0, kind: input, shape index: {}]
  %s1 = inlined_call_operand.vmem [shape: bf16[128,256], index: 1, kind: input, shape index: {}]
  %s2 = inlined_call_operand.vmem [shape: f32[1,256], index: 2, kind: input, shape index: {}]
  %s3 = inlined_call_operand.vmem [shape: bf16[256,128], index: 3, kind: input, shape index: {}]
  %s4 = inlined_call_operand.vmem [shape: f32[1,128], index: 4, kind: input, shape index: {}]
  %s5 = inlined_call_operand.vmem [shape: f32[402,128], index: 5, kind: output, shape index: {}]
  %s6 = sld [smem:[#allocation0]]
  $region38: #{position_wise_feed_forward.1} parent=0
    _
  %s8 = ssub.s32 1, %s6
  %s9 = scalar_select 0, %s8, %s6
  // Predicated region
  $region2: #{position_wise_feed_forward.1} parent=0 // pred_check
    _
  $region3: #{position_wise_feed_forward.1} parent=0 // pred_check_branch
    %11 = sbr.rel (0) target = $region5
  $region4: #{position_wise_feed_forward.1} parent=0 // pred_region
    _
  $region5: #{position_wise_feed_forward.1} parent=0 // pred_fallthru
    _
  // Predicated region
  $region6: #{position_wise_feed_forward.1} parent=0 // pred_check
    _
  $region7: #{position_wise_feed_forward.1} parent=0 // pred_check_branch
    %13 = sbr.rel (0) target = $region9
  $region8: #{position_wise_feed_forward.1} parent=0 // pred_region
    _
  $region9: #{position_wise_feed_forward.1} parent=0 // pred_fallthru
    _
  // Predicated region
  $region10: #{position_wise_feed_forward.1} parent=0 // pred_check
    _
  $region11: #{position_wise_feed_forward.1} parent=0 // pred_check_branch
    %15 = sbr.rel (0) target = $region13
  $region12: #{position_wise_feed_forward.1} parent=0 // pred_region
    _
  $region13: #{position_wise_feed_forward.1} parent=0 // pred_fallthru
    _
  // Predicated region
  $region14: #{position_wise_feed_forward.1} parent=0 // pred_check
    _
  $region15: #{position_wise_feed_forward.1} parent=0 // pred_check_branch
    %17 = sbr.rel (0) target = $region17
  $region16: #{position_wise_feed_forward.1} parent=0 // pred_region
    _
  $region17: #{position_wise_feed_forward.1} parent=0 // pred_fallthru
    _
  // Predicated region
  $region18: #{position_wise_feed_forward.1} parent=0 // pred_check
    _
  $region19: #{position_wise_feed_forward.1} parent=0 // pred_check_branch
    %19 = sbr.rel (0) target = $region21
  $region20: #{position_wise_feed_forward.1} parent=0 // pred_region
    _
  $region21: #{position_wise_feed_forward.1} parent=0 // pred_fallthru
    _
  %v21 = vld [vmem:[%s0] sm:$0xff]
  %v22 = vld [vmem:[%s0 + $0x8] sm:$0xff]
  %v23 = vld [vmem:[%s0 + $0x10] sm:$0xff]
  %v24 = vld [vmem:[%s0 + $0x18] sm:$0xff]
  %v25 = vld [vmem:[%s0 + $0x20] sm:$0xff]
  %v26 = vld [vmem:[%s0 + $0x28] sm:$0xff]
  %v27 = vld [vmem:[%s0 + $0x30] sm:$0xff]
  %v28 = vld [vmem:[%s0 + $0x38] sm:$0xff]
  %v29 = vld [vmem:[%s0 + $0x40] sm:$0xff]
  %v30 = vld [vmem:[%s0 + $0x48] sm:$0xff]
  %v31 = vld [vmem:[%s0 + $0x50] sm:$0xff]
  %v32 = vld [vmem:[%s0 + $0x58] sm:$0xff]
  %v33 = vld [vmem:[%s0 + $0x60] sm:$0xff]
  %v34 = vld [vmem:[%s0 + $0x68] sm:$0xff]
  %v35 = vld [vmem:[%s0 + $0x70] sm:$0xff]
  %v36 = vld [vmem:[%s0 + $0x78] sm:$0xff]
  %v37 = vld [vmem:[%s0 + $0x80] sm:$0xff]
  %v38 = vld [vmem:[%s0 + $0x88] sm:$0xff]
  %v39 = vld [vmem:[%s0 + $0x90] sm:$0xff]
  %v40 = vld [vmem:[%s0 + $0x98] sm:$0xff]
  %v41 = vld [vmem:[%s0 + $0xa0] sm:$0xff]
  %v42 = vld [vmem:[%s0 + $0xa8] sm:$0xff]
  %v43 = vld [vmem:[%s0 + $0xb0] sm:$0xff]
  %v44 = vld [vmem:[%s0 + $0xb8] sm:$0xff]
  %v45 = vld [vmem:[%s0 + $0xc0] sm:$0xff]
  %v46 = vld [vmem:[%s0 + $0xc8] sm:$0xff]
  %v47 = vld [vmem:[%s0 + $0xd0] sm:$0xff]
  %v48 = vld [vmem:[%s0 + $0xd8] sm:$0xff]
  %v49 = vld [vmem:[%s0 + $0xe0] sm:$0xff]
  %v50 = vld [vmem:[%s0 + $0xe8] sm:$0xff]
  %v51 = vld [vmem:[%s0 + $0xf0] sm:$0xff]
  %v52 = vld [vmem:[%s0 + $0xf8] sm:$0xff]
  %v53 = vld [vmem:[%s0 + $0x100] sm:$0xff]
  %v54 = vld [vmem:[%s0 + $0x108] sm:$0xff]
  %v55 = vld [vmem:[%s0 + $0x110] sm:$0xff]
  %v56 = vld [vmem:[%s0 + $0x118] sm:$0xff]
  %v57 = vld [vmem:[%s0 + $0x120] sm:$0xff]
  %v58 = vld [vmem:[%s0 + $0x128] sm:$0xff]
  %v59 = vld [vmem:[%s0 + $0x130] sm:$0xff]
  %v60 = vld [vmem:[%s0 + $0x138] sm:$0xff]
  %v61 = vld [vmem:[%s0 + $0x140] sm:$0xff]
  %v62 = vld [vmem:[%s0 + $0x148] sm:$0xff]
  %v63 = vld [vmem:[%s0 + $0x150] sm:$0xff]
  %v64 = vld [vmem:[%s0 + $0x158] sm:$0xff]
  %v65 = vld [vmem:[%s0 + $0x160] sm:$0xff]
  %v66 = vld [vmem:[%s0 + $0x168] sm:$0xff]
  %v67 = vld [vmem:[%s0 + $0x170] sm:$0xff]
  %v68 = vld [vmem:[%s0 + $0x178] sm:$0xff]
  %v69 = vld [vmem:[%s0 + $0x180] sm:$0xff]
  %v70 = vld [vmem:[%s0 + $0x188] sm:$0xff]
  %v71 = vld [vmem:[%s0 + $0x190] sm:$0xff]
  %v72 = vpack.c.bf16 %v22, %v21
  %v73 = vpack.c.bf16 %v24, %v23
  %v74 = vpack.c.bf16 %v26, %v25
  %v75 = vpack.c.bf16 %v28, %v27
  %v76 = vpack.c.bf16 %v30, %v29
  %v77 = vpack.c.bf16 %v32, %v31
  %v78 = vpack.c.bf16 %v34, %v33
  %v79 = vpack.c.bf16 %v36, %v35
  %v80 = vpack.c.bf16 %v38, %v37
  %v81 = vpack.c.bf16 %v40, %v39
  %v82 = vpack.c.bf16 %v42, %v41
  %v83 = vpack.c.bf16 %v44, %v43
  %v84 = vpack.c.bf16 %v46, %v45
  %v85 = vpack.c.bf16 %v48, %v47
  %v86 = vpack.c.bf16 %v50, %v49
  %v87 = vpack.c.bf16 %v52, %v51
  %v88 = vpack.c.bf16 %v54, %v53
  %v89 = vpack.c.bf16 %v56, %v55
  %v90 = vpack.c.bf16 %v58, %v57
  %v91 = vpack.c.bf16 %v60, %v59
  %v92 = vpack.c.bf16 %v62, %v61
  %v93 = vpack.c.bf16 %v64, %v63
  %v94 = vpack.c.bf16 %v66, %v65
  %v95 = vpack.c.bf16 %v68, %v67
  %v96 = vpack.c.bf16 %v70, %v69
  %v97 = vpack.c.bf16 %v71, %v71
  %v98 = vld [vmem:[%s1] sm:$0xff]
  %v99 = vld [vmem:[%s1 + $0x8] sm:$0xff]
  %v100 = vld [vmem:[%s1 + $0x10] sm:$0xff]
  %v101 = vld [vmem:[%s1 + $0x18] sm:$0xff]
  %v102 = vld [vmem:[%s1 + $0x20] sm:$0xff]
  %v103 = vld [vmem:[%s1 + $0x28] sm:$0xff]
  %v104 = vld [vmem:[%s1 + $0x30] sm:$0xff]
  %v105 = vld [vmem:[%s1 + $0x38] sm:$0xff]
  %v106 = vld [vmem:[%s1 + $0x40] sm:$0xff]
  %v107 = vld [vmem:[%s1 + $0x48] sm:$0xff]
  %v108 = vld [vmem:[%s1 + $0x50] sm:$0xff]
  %v109 = vld [vmem:[%s1 + $0x58] sm:$0xff]
  %v110 = vld [vmem:[%s1 + $0x60] sm:$0xff]
  %v111 = vld [vmem:[%s1 + $0x68] sm:$0xff]
  %v112 = vld [vmem:[%s1 + $0x70] sm:$0xff]
  %v113 = vld [vmem:[%s1 + $0x78] sm:$0xff]
  %v114 = vld [vmem:[%s2] sm:$0x3]
  %v116 = vlaneseq
  %v117 = vshrl.u32 %v116, 7
  %v118 = vsub.s32 0, %v117
  %v119 = vrot.slane %v114, %v118
  %v120 = vlaneseq
  %v121 = vshrl.u32 %v120, 7
  %v122 = vsub.s32 1, %v121
  %v123 = vrot.slane %v114, %v122
  %v142 = vunpack.c.l.b16 %v98
  %v143 = vunpack.c.h.b16 %v98
  %v144 = vunpack.c.l.b16 %v99
  %v145 = vunpack.c.h.b16 %v99
  %v146 = vunpack.c.l.b16 %v100
  %v147 = vunpack.c.h.b16 %v100
  %v148 = vunpack.c.l.b16 %v101
  %v149 = vunpack.c.h.b16 %v101
  %v150 = vunpack.c.l.b16 %v102
  %v151 = vunpack.c.h.b16 %v102
  %v152 = vunpack.c.l.b16 %v103
  %v153 = vunpack.c.h.b16 %v103
  %v154 = vunpack.c.l.b16 %v104
  %v155 = vunpack.c.h.b16 %v104
  %v156 = vunpack.c.l.b16 %v105
  %v157 = vunpack.c.h.b16 %v105
  %v158 = vunpack.c.l.b16 %v106
  %v159 = vunpack.c.h.b16 %v106
  %v160 = vunpack.c.l.b16 %v107
  %v161 = vunpack.c.h.b16 %v107
  %v162 = vunpack.c.l.b16 %v108
  %v163 = vunpack.c.h.b16 %v108
  %v164 = vunpack.c.l.b16 %v109
  %v165 = vunpack.c.h.b16 %v109
  %v166 = vunpack.c.l.b16 %v110
  %v167 = vunpack.c.h.b16 %v110
  %v168 = vunpack.c.l.b16 %v111
  %v169 = vunpack.c.h.b16 %v111
  %v170 = vunpack.c.l.b16 %v112
  %v171 = vunpack.c.h.b16 %v112
  %v172 = vunpack.c.l.b16 %v113
  %v173 = vunpack.c.h.b16 %v113
  %v174 = vpack.c.b16 %v144, %v142
  %v175 = vpack.c.b16 %v145, %v143
  %v176 = vpack.c.b16 %v148, %v146
  %v177 = vpack.c.b16 %v149, %v147
  %v178 = vpack.c.b16 %v152, %v150
  %v179 = vpack.c.b16 %v153, %v151
  %v180 = vpack.c.b16 %v156, %v154
  %v181 = vpack.c.b16 %v157, %v155
  %v182 = vpack.c.b16 %v160, %v158
  %v183 = vpack.c.b16 %v161, %v159
  %v184 = vpack.c.b16 %v164, %v162
  %v185 = vpack.c.b16 %v165, %v163
  %v186 = vpack.c.b16 %v168, %v166
  %v187 = vpack.c.b16 %v169, %v167
  %v188 = vpack.c.b16 %v172, %v170
  %v189 = vpack.c.b16 %v173, %v171
  %206 = vmatprep.subr.bf16.mxu0 %v175
  %207 = vmatpush1.bf16.msra.mxu0 %v174
  %208 = vmatprep.subr.bf16.mxu0 %v177
  %209 = vmatpush1.bf16.msra.mxu0 %v176
  %210 = vmatprep.subr.bf16.mxu0 %v179
  %211 = vmatpush1.bf16.msra.mxu0 %v178
  %212 = vmatprep.subr.bf16.mxu0 %v181
  %213 = vmatpush1.bf16.msra.mxu0 %v180
  %214 = vmatprep.subr.bf16.mxu0 %v183
  %215 = vmatpush1.bf16.msra.mxu0 %v182
  %216 = vmatprep.subr.bf16.mxu0 %v185
  %217 = vmatpush1.bf16.msra.mxu0 %v184
  %218 = vmatprep.subr.bf16.mxu0 %v187
  %219 = vmatpush1.bf16.msra.mxu0 %v186
  %220 = vmatprep.subr.bf16.mxu0 %v189
  %221 = vmatpush1.bf16.msra.mxu0 %v188
  %222 = vmatprep.subr.bf16.mxu0 0
  %223 = vmatpush1.bf16.msra.mxu0 0
  %224 = vmatprep.subr.bf16.mxu0 0
  %225 = vmatpush1.bf16.msra.mxu0 0
  %226 = vmatprep.subr.bf16.mxu0 0
  %227 = vmatpush1.bf16.msra.mxu0 0
  %228 = vmatprep.subr.bf16.mxu0 0
  %229 = vmatpush1.bf16.msra.mxu0 0
  %230 = vmatprep.subr.bf16.mxu0 0
  %231 = vmatpush1.bf16.msra.mxu0 0
  %232 = vmatprep.subr.bf16.mxu0 0
  %233 = vmatpush1.bf16.msra.mxu0 0
  %234 = vmatprep.subr.bf16.mxu0 0
  %235 = vmatpush1.bf16.msra.mxu0 0
  %236 = vmatprep.subr.bf16.mxu0 0
  %237 = vmatpush1.bf16.msra.mxu0 0
  %238 = vmatprep.mubr.bf16.mxu0 0
  %239 = vmatmul.mubr.bf16.gmra.mrb[0].mxu0 %v72
  %v240 = vpop.f32.mrb[0].mxu0
  %v241 = vadd.f32 %v119, %v240
  %v242 = vpop.f32.mrb[0].mxu0
  %v243 = vadd.f32 %v123, %v242
  %v244 = vpop.f32.mrb[0].mxu0
  %v245 = vadd.f32 %v119, %v244
  %v246 = vpop.f32.mrb[0].mxu0
  %v247 = vadd.f32 %v123, %v246
  %248 = vmatprep.mubr.bf16.mxu0 0
  %249 = vmatmul.mubr.bf16.gmra.mrb[0].mxu0 %v73
  %v250 = vpop.f32.mrb[0].mxu0
  %v251 = vadd.f32 %v119, %v250
  %v252 = vpop.f32.mrb[0].mxu0
  %v253 = vadd.f32 %v123, %v252
  %v254 = vpop.f32.mrb[0].mxu0
  %v255 = vadd.f32 %v119, %v254
  %v256 = vpop.f32.mrb[0].mxu0
  %v257 = vadd.f32 %v123, %v256
  %258 = vmatprep.mubr.bf16.mxu0 0
  %259 = vmatmul.mubr.bf16.gmra.mrb[0].mxu0 %v74
  %v260 = vpop.f32.mrb[0].mxu0
  %v261 = vadd.f32 %v119, %v260
  %v262 = vpop.f32.mrb[0].mxu0
  %v263 = vadd.f32 %v123, %v262
  %v264 = vpop.f32.mrb[0].mxu0
  %v265 = vadd.f32 %v119, %v264
  %v266 = vpop.f32.mrb[0].mxu0
  %v267 = vadd.f32 %v123, %v266
  %268 = vmatprep.mubr.bf16.mxu0 0
  %269 = vmatmul.mubr.bf16.gmra.mrb[0].mxu0 %v75
  %v270 = vpop.f32.mrb[0].mxu0
  %v271 = vadd.f32 %v119, %v270
  %v272 = vpop.f32.mrb[0].mxu0
  %v273 = vadd.f32 %v123, %v272
  %v274 = vpop.f32.mrb[0].mxu0
  %v275 = vadd.f32 %v119, %v274
  %v276 = vpop.f32.mrb[0].mxu0
  %v277 = vadd.f32 %v123, %v276
  %278 = vmatprep.mubr.bf16.mxu0 0
  %279 = vmatmul.mubr.bf16.gmra.mrb[0].mxu0 %v76
  %v280 = vpop.f32.mrb[0].mxu0
  %v281 = vadd.f32 %v119, %v280
  %v282 = vpop.f32.mrb[0].mxu0
  %v283 = vadd.f32 %v123, %v282
  %v284 = vpop.f32.mrb[0].mxu0
  %v285 = vadd.f32 %v119, %v284
  %v286 = vpop.f32.mrb[0].mxu0
  %v287 = vadd.f32 %v123, %v286
  %288 = vmatprep.mubr.bf16.mxu0 0
  %289 = vmatmul.mubr.bf16.gmra.mrb[0].mxu0 %v77
  %v290 = vpop.f32.mrb[0].mxu0
  %v291 = vadd.f32 %v119, %v290
  %v292 = vpop.f32.mrb[0].mxu0
  %v293 = vadd.f32 %v123, %v292
  %v294 = vpop.f32.mrb[0].mxu0
  %v295 = vadd.f32 %v119, %v294
  %v296 = vpop.f32.mrb[0].mxu0
  %v297 = vadd.f32 %v123, %v296
  %298 = vmatprep.mubr.bf16.mxu0 0
  %299 = vmatmul.mubr.bf16.gmra.mrb[0].mxu0 %v78
  %v300 = vpop.f32.mrb[0].mxu0
  %v301 = vadd.f32 %v119, %v300
  %v302 = vpop.f32.mrb[0].mxu0
  %v303 = vadd.f32 %v123, %v302
  %v304 = vpop.f32.mrb[0].mxu0
  %v305 = vadd.f32 %v119, %v304
  %v306 = vpop.f32.mrb[0].mxu0
  %v307 = vadd.f32 %v123, %v306
  %308 = vmatprep.mubr.bf16.mxu0 0
  %309 = vmatmul.mubr.bf16.gmra.mrb[0].mxu0 %v79
  %v310 = vpop.f32.mrb[0].mxu0
  %v311 = vadd.f32 %v119, %v310
  %v312 = vpop.f32.mrb[0].mxu0
  %v313 = vadd.f32 %v123, %v312
  %v314 = vpop.f32.mrb[0].mxu0
  %v315 = vadd.f32 %v119, %v314
  %v316 = vpop.f32.mrb[0].mxu0
  %v317 = vadd.f32 %v123, %v316
  %318 = vmatprep.mubr.bf16.mxu0 0
  %319 = vmatmul.mubr.bf16.gmra.mrb[0].mxu0 %v80
  %v320 = vpop.f32.mrb[0].mxu0
  %v321 = vadd.f32 %v119, %v320
  %v322 = vpop.f32.mrb[0].mxu0
  %v323 = vadd.f32 %v123, %v322
  %v324 = vpop.f32.mrb[0].mxu0
  %v325 = vadd.f32 %v119, %v324
  %v326 = vpop.f32.mrb[0].mxu0
  %v327 = vadd.f32 %v123, %v326
  %328 = vmatprep.mubr.bf16.mxu0 0
  %329 = vmatmul.mubr.bf16.gmra.mrb[0].mxu0 %v81
  %v330 = vpop.f32.mrb[0].mxu0
  %v331 = vadd.f32 %v119, %v330
  %v332 = vpop.f32.mrb[0].mxu0
  %v333 = vadd.f32 %v123, %v332
  %v334 = vpop.f32.mrb[0].mxu0
  %v335 = vadd.f32 %v119, %v334
  %v336 = vpop.f32.mrb[0].mxu0
  %v337 = vadd.f32 %v123, %v336
  %338 = vmatprep.mubr.bf16.mxu0 0
  %339 = vmatmul.mubr.bf16.gmra.mrb[0].mxu0 %v82
  %v340 = vpop.f32.mrb[0].mxu0
  %v341 = vadd.f32 %v119, %v340
  %v342 = vpop.f32.mrb[0].mxu0
  %v343 = vadd.f32 %v123, %v342
  %v344 = vpop.f32.mrb[0].mxu0
  %v345 = vadd.f32 %v119, %v344
  %v346 = vpop.f32.mrb[0].mxu0
  %v347 = vadd.f32 %v123, %v346
  %348 = vmatprep.mubr.bf16.mxu0 0
  %349 = vmatmul.mubr.bf16.gmra.mrb[0].mxu0 %v83
  %v350 = vpop.f32.mrb[0].mxu0
  %v351 = vadd.f32 %v119, %v350
  %v352 = vpop.f32.mrb[0].mxu0
  %v353 = vadd.f32 %v123, %v352
  %v354 = vpop.f32.mrb[0].mxu0
  %v355 = vadd.f32 %v119, %v354
  %v356 = vpop.f32.mrb[0].mxu0
  %v357 = vadd.f32 %v123, %v356
  %358 = vmatprep.mubr.bf16.mxu0 0
  %359 = vmatmul.mubr.bf16.gmra.mrb[0].mxu0 %v84
  %v360 = vpop.f32.mrb[0].mxu0
  %v361 = vadd.f32 %v119, %v360
  %v362 = vpop.f32.mrb[0].mxu0
  %v363 = vadd.f32 %v123, %v362
  %v364 = vpop.f32.mrb[0].mxu0
  %v365 = vadd.f32 %v119, %v364
  %v366 = vpop.f32.mrb[0].mxu0
  %v367 = vadd.f32 %v123, %v366
  %368 = vmatprep.mubr.bf16.mxu0 0
  %369 = vmatmul.mubr.bf16.gmra.mrb[0].mxu0 %v85
  %v370 = vpop.f32.mrb[0].mxu0
  %v371 = vadd.f32 %v119, %v370
  %v372 = vpop.f32.mrb[0].mxu0
  %v373 = vadd.f32 %v123, %v372
  %v374 = vpop.f32.mrb[0].mxu0
  %v375 = vadd.f32 %v119, %v374
  %v376 = vpop.f32.mrb[0].mxu0
  %v377 = vadd.f32 %v123, %v376
  %378 = vmatprep.mubr.bf16.mxu0 0
  %379 = vmatmul.mubr.bf16.gmra.mrb[0].mxu0 %v86
  %v380 = vpop.f32.mrb[0].mxu0
  %v381 = vadd.f32 %v119, %v380
  %v382 = vpop.f32.mrb[0].mxu0
  %v383 = vadd.f32 %v123, %v382
  %v384 = vpop.f32.mrb[0].mxu0
  %v385 = vadd.f32 %v119, %v384
  %v386 = vpop.f32.mrb[0].mxu0
  %v387 = vadd.f32 %v123, %v386
  %388 = vmatprep.mubr.bf16.mxu0 0
  %389 = vmatmul.mubr.bf16.gmra.mrb[0].mxu0 %v87
  %v390 = vpop.f32.mrb[0].mxu0
  %v391 = vadd.f32 %v119, %v390
  %v392 = vpop.f32.mrb[0].mxu0
  %v393 = vadd.f32 %v123, %v392
  %v394 = vpop.f32.mrb[0].mxu0
  %v395 = vadd.f32 %v119, %v394
  %v396 = vpop.f32.mrb[0].mxu0
  %v397 = vadd.f32 %v123, %v396
  %398 = vmatprep.mubr.bf16.mxu0 0
  %399 = vmatmul.mubr.bf16.gmra.mrb[0].mxu0 %v88
  %v400 = vpop.f32.mrb[0].mxu0
  %v401 = vadd.f32 %v119, %v400
  %v402 = vpop.f32.mrb[0].mxu0
  %v403 = vadd.f32 %v123, %v402
  %v404 = vpop.f32.mrb[0].mxu0
  %v405 = vadd.f32 %v119, %v404
  %v406 = vpop.f32.mrb[0].mxu0
  %v407 = vadd.f32 %v123, %v406
  %408 = vmatprep.mubr.bf16.mxu0 0
  %409 = vmatmul.mubr.bf16.gmra.mrb[0].mxu0 %v89
  %v410 = vpop.f32.mrb[0].mxu0
  %v411 = vadd.f32 %v119, %v410
  %v412 = vpop.f32.mrb[0].mxu0
  %v413 = vadd.f32 %v123, %v412
  %v414 = vpop.f32.mrb[0].mxu0
  %v415 = vadd.f32 %v119, %v414
  %v416 = vpop.f32.mrb[0].mxu0
  %v417 = vadd.f32 %v123, %v416
  %418 = vmatprep.mubr.bf16.mxu0 0
  %419 = vmatmul.mubr.bf16.gmra.mrb[0].mxu0 %v90
  %v420 = vpop.f32.mrb[0].mxu0
  %v421 = vadd.f32 %v119, %v420
  %v422 = vpop.f32.mrb[0].mxu0
  %v423 = vadd.f32 %v123, %v422
  %v424 = vpop.f32.mrb[0].mxu0
  %v425 = vadd.f32 %v119, %v424
  %v426 = vpop.f32.mrb[0].mxu0
  %v427 = vadd.f32 %v123, %v426
  %428 = vmatprep.mubr.bf16.mxu0 0
  %429 = vmatmul.mubr.bf16.gmra.mrb[0].mxu0 %v91
  %v430 = vpop.f32.mrb[0].mxu0
  %v431 = vadd.f32 %v119, %v430
  %v432 = vpop.f32.mrb[0].mxu0
  %v433 = vadd.f32 %v123, %v432
  %v434 = vpop.f32.mrb[0].mxu0
  %v435 = vadd.f32 %v119, %v434
  %v436 = vpop.f32.mrb[0].mxu0
  %v437 = vadd.f32 %v123, %v436
  %438 = vmatprep.mubr.bf16.mxu0 0
  %439 = vmatmul.mubr.bf16.gmra.mrb[0].mxu0 %v92
  %v440 = vpop.f32.mrb[0].mxu0
  %v441 = vadd.f32 %v119, %v440
  %v442 = vpop.f32.mrb[0].mxu0
  %v443 = vadd.f32 %v123, %v442
  %v444 = vpop.f32.mrb[0].mxu0
  %v445 = vadd.f32 %v119, %v444
  %v446 = vpop.f32.mrb[0].mxu0
  %v447 = vadd.f32 %v123, %v446
  %448 = vmatprep.mubr.bf16.mxu0 0
  %449 = vmatmul.mubr.bf16.gmra.mrb[0].mxu0 %v93
  %v450 = vpop.f32.mrb[0].mxu0
  %v451 = vadd.f32 %v119, %v450
  %v452 = vpop.f32.mrb[0].mxu0
  %v453 = vadd.f32 %v123, %v452
  %v454 = vpop.f32.mrb[0].mxu0
  %v455 = vadd.f32 %v119, %v454
  %v456 = vpop.f32.mrb[0].mxu0
  %v457 = vadd.f32 %v123, %v456
  %458 = vmatprep.mubr.bf16.mxu0 0
  %459 = vmatmul.mubr.bf16.gmra.mrb[0].mxu0 %v94
  %v460 = vpop.f32.mrb[0].mxu0
  %v461 = vadd.f32 %v119, %v460
  %v462 = vpop.f32.mrb[0].mxu0
  %v463 = vadd.f32 %v123, %v462
  %v464 = vpop.f32.mrb[0].mxu0
  %v465 = vadd.f32 %v119, %v464
  %v466 = vpop.f32.mrb[0].mxu0
  %v467 = vadd.f32 %v123, %v466
  %468 = vmatprep.mubr.bf16.mxu0 0
  %469 = vmatmul.mubr.bf16.gmra.mrb[0].mxu0 %v95
  %v470 = vpop.f32.mrb[0].mxu0
  %v471 = vadd.f32 %v119, %v470
  %v472 = vpop.f32.mrb[0].mxu0
  %v473 = vadd.f32 %v123, %v472
  %v474 = vpop.f32.mrb[0].mxu0
  %v475 = vadd.f32 %v119, %v474
  %v476 = vpop.f32.mrb[0].mxu0
  %v477 = vadd.f32 %v123, %v476
  %478 = vmatprep.mubr.bf16.mxu0 0
  %479 = vmatmul.mubr.bf16.gmra.mrb[0].mxu0 %v96
  %v480 = vpop.f32.mrb[0].mxu0
  %v481 = vadd.f32 %v119, %v480
  %v482 = vpop.f32.mrb[0].mxu0
  %v483 = vadd.f32 %v123, %v482
  %v484 = vpop.f32.mrb[0].mxu0
  %v485 = vadd.f32 %v119, %v484
  %v486 = vpop.f32.mrb[0].mxu0
  %v487 = vadd.f32 %v123, %v486
  %488 = vmatprep.mubr.bf16.mxu0 0
  %489 = vmatmul.mubr.bf16.gmra.mrb[0].mxu0 %v97
  %v490 = vpop.f32.mrb[0].mxu0
  %v491 = vadd.f32 %v119, %v490
  %v492 = vpop.f32.mrb[0].mxu0
  %v493 = vadd.f32 %v123, %v492
  %v494 = vpop.f32.mrb[0].mxu0
  %v495 = vpop.f32.mrb[0].mxu0
  %496 = vdwg.mxu0
  %v497 = vmax.f32 %v241, 0.0
  %v498 = vmax.f32 %v243, 0.0
  %v499 = vmax.f32 %v245, 0.0
  %v500 = vmax.f32 %v247, 0.0
  %v501 = vmax.f32 %v251, 0.0
  %v502 = vmax.f32 %v253, 0.0
  %v503 = vmax.f32 %v255, 0.0
  %v504 = vmax.f32 %v257, 0.0
  %v505 = vmax.f32 %v261, 0.0
  %v506 = vmax.f32 %v263, 0.0
  %v507 = vmax.f32 %v265, 0.0
  %v508 = vmax.f32 %v267, 0.0
  %v509 = vmax.f32 %v271, 0.0
  %v510 = vmax.f32 %v273, 0.0
  %v511 = vmax.f32 %v275, 0.0
  %v512 = vmax.f32 %v277, 0.0
  %v513 = vmax.f32 %v281, 0.0
  %v514 = vmax.f32 %v283, 0.0
  %v515 = vmax.f32 %v285, 0.0
  %v516 = vmax.f32 %v287, 0.0
  %v517 = vmax.f32 %v291, 0.0
  %v518 = vmax.f32 %v293, 0.0
  %v519 = vmax.f32 %v295, 0.0
  %v520 = vmax.f32 %v297, 0.0
  %v521 = vmax.f32 %v301, 0.0
  %v522 = vmax.f32 %v303, 0.0
  %v523 = vmax.f32 %v305, 0.0
  %v524 = vmax.f32 %v307, 0.0
  %v525 = vmax.f32 %v311, 0.0
  %v526 = vmax.f32 %v313, 0.0
  %v527 = vmax.f32 %v315, 0.0
  %v528 = vmax.f32 %v317, 0.0
  %v529 = vmax.f32 %v321, 0.0
  %v530 = vmax.f32 %v323, 0.0
  %v531 = vmax.f32 %v325, 0.0
  %v532 = vmax.f32 %v327, 0.0
  %v533 = vmax.f32 %v331, 0.0
  %v534 = vmax.f32 %v333, 0.0
  %v535 = vmax.f32 %v335, 0.0
  %v536 = vmax.f32 %v337, 0.0
  %v537 = vmax.f32 %v341, 0.0
  %v538 = vmax.f32 %v343, 0.0
  %v539 = vmax.f32 %v345, 0.0
  %v540 = vmax.f32 %v347, 0.0
  %v541 = vmax.f32 %v351, 0.0
  %v542 = vmax.f32 %v353, 0.0
  %v543 = vmax.f32 %v355, 0.0
  %v544 = vmax.f32 %v357, 0.0
  %v545 = vmax.f32 %v361, 0.0
  %v546 = vmax.f32 %v363, 0.0
  %v547 = vmax.f32 %v365, 0.0
  %v548 = vmax.f32 %v367, 0.0
  %v549 = vmax.f32 %v371, 0.0
  %v550 = vmax.f32 %v373, 0.0
  %v551 = vmax.f32 %v375, 0.0
  %v552 = vmax.f32 %v377, 0.0
  %v553 = vmax.f32 %v381, 0.0
  %v554 = vmax.f32 %v383, 0.0
  %v555 = vmax.f32 %v385, 0.0
  %v556 = vmax.f32 %v387, 0.0
  %v557 = vmax.f32 %v391, 0.0
  %v558 = vmax.f32 %v393, 0.0
  %v559 = vmax.f32 %v395, 0.0
  %v560 = vmax.f32 %v397, 0.0
  %v561 = vmax.f32 %v401, 0.0
  %v562 = vmax.f32 %v403, 0.0
  %v563 = vmax.f32 %v405, 0.0
  %v564 = vmax.f32 %v407, 0.0
  %v565 = vmax.f32 %v411, 0.0
  %v566 = vmax.f32 %v413, 0.0
  %v567 = vmax.f32 %v415, 0.0
  %v568 = vmax.f32 %v417, 0.0
  %v569 = vmax.f32 %v421, 0.0
  %v570 = vmax.f32 %v423, 0.0
  %v571 = vmax.f32 %v425, 0.0
  %v572 = vmax.f32 %v427, 0.0
  %v573 = vmax.f32 %v431, 0.0
  %v574 = vmax.f32 %v433, 0.0
  %v575 = vmax.f32 %v435, 0.0
  %v576 = vmax.f32 %v437, 0.0
  %v577 = vmax.f32 %v441, 0.0
  %v578 = vmax.f32 %v443, 0.0
  %v579 = vmax.f32 %v445, 0.0
  %v580 = vmax.f32 %v447, 0.0
  %v581 = vmax.f32 %v451, 0.0
  %v582 = vmax.f32 %v453, 0.0
  %v583 = vmax.f32 %v455, 0.0
  %v584 = vmax.f32 %v457, 0.0
  %v585 = vmax.f32 %v461, 0.0
  %v586 = vmax.f32 %v463, 0.0
  %v587 = vmax.f32 %v465, 0.0
  %v588 = vmax.f32 %v467, 0.0
  %v589 = vmax.f32 %v471, 0.0
  %v590 = vmax.f32 %v473, 0.0
  %v591 = vmax.f32 %v475, 0.0
  %v592 = vmax.f32 %v477, 0.0
  %v593 = vmax.f32 %v481, 0.0
  %v594 = vmax.f32 %v483, 0.0
  %v595 = vmax.f32 %v485, 0.0
  %v596 = vmax.f32 %v487, 0.0
  %v597 = vmax.f32 %v491, 0.0
  %v598 = vmax.f32 %v493, 0.0
  %v599 = vpack.c.bf16 %v499, %v497
  %v600 = vpack.c.bf16 %v500, %v498
  %v601 = vpack.c.bf16 %v503, %v501
  %v602 = vpack.c.bf16 %v504, %v502
  %v603 = vpack.c.bf16 %v507, %v505
  %v604 = vpack.c.bf16 %v508, %v506
  %v605 = vpack.c.bf16 %v511, %v509
  %v606 = vpack.c.bf16 %v512, %v510
  %v607 = vpack.c.bf16 %v515, %v513
  %v608 = vpack.c.bf16 %v516, %v514
  %v609 = vpack.c.bf16 %v519, %v517
  %v610 = vpack.c.bf16 %v520, %v518
  %v611 = vpack.c.bf16 %v523, %v521
  %v612 = vpack.c.bf16 %v524, %v522
  %v613 = vpack.c.bf16 %v527, %v525
  %v614 = vpack.c.bf16 %v528, %v526
  %v615 = vpack.c.bf16 %v531, %v529
  %v616 = vpack.c.bf16 %v532, %v530
  %v617 = vpack.c.bf16 %v535, %v533
  %v618 = vpack.c.bf16 %v536, %v534
  %v619 = vpack.c.bf16 %v539, %v537
  %v620 = vpack.c.bf16 %v540, %v538
  %v621 = vpack.c.bf16 %v543, %v541
  %v622 = vpack.c.bf16 %v544, %v542
  %v623 = vpack.c.bf16 %v547, %v545
  %v624 = vpack.c.bf16 %v548, %v546
  %v625 = vpack.c.bf16 %v551, %v549
  %v626 = vpack.c.bf16 %v552, %v550
  %v627 = vpack.c.bf16 %v555, %v553
  %v628 = vpack.c.bf16 %v556, %v554
  %v629 = vpack.c.bf16 %v559, %v557
  %v630 = vpack.c.bf16 %v560, %v558
  %v631 = vpack.c.bf16 %v563, %v561
  %v632 = vpack.c.bf16 %v564, %v562
  %v633 = vpack.c.bf16 %v567, %v565
  %v634 = vpack.c.bf16 %v568, %v566
  %v635 = vpack.c.bf16 %v571, %v569
  %v636 = vpack.c.bf16 %v572, %v570
  %v637 = vpack.c.bf16 %v575, %v573
  %v638 = vpack.c.bf16 %v576, %v574
  %v639 = vpack.c.bf16 %v579, %v577
  %v640 = vpack.c.bf16 %v580, %v578
  %v641 = vpack.c.bf16 %v583, %v581
  %v642 = vpack.c.bf16 %v584, %v582
  %v643 = vpack.c.bf16 %v587, %v585
  %v644 = vpack.c.bf16 %v588, %v586
  %v645 = vpack.c.bf16 %v591, %v589
  %v646 = vpack.c.bf16 %v592, %v590
  %v647 = vpack.c.bf16 %v595, %v593
  %v648 = vpack.c.bf16 %v596, %v594
  %v649 = vpack.c.bf16 %v597, %v597
  %v650 = vpack.c.bf16 %v598, %v598
  %v651 = vld [vmem:[%s3] sm:$0xf]
  %v652 = vld [vmem:[%s3 + $0x4] sm:$0xf]
  %v653 = vld [vmem:[%s3 + $0x8] sm:$0xf]
  %v654 = vld [vmem:[%s3 + $0xc] sm:$0xf]
  %v655 = vld [vmem:[%s3 + $0x10] sm:$0xf]
  %v656 = vld [vmem:[%s3 + $0x14] sm:$0xf]
  %v657 = vld [vmem:[%s3 + $0x18] sm:$0xf]
  %v658 = vld [vmem:[%s3 + $0x1c] sm:$0xf]
  %v659 = vld [vmem:[%s3 + $0x20] sm:$0xf]
  %v660 = vld [vmem:[%s3 + $0x24] sm:$0xf]
  %v661 = vld [vmem:[%s3 + $0x28] sm:$0xf]
  %v662 = vld [vmem:[%s3 + $0x2c] sm:$0xf]
  %v663 = vld [vmem:[%s3 + $0x30] sm:$0xf]
  %v664 = vld [vmem:[%s3 + $0x34] sm:$0xf]
  %v665 = vld [vmem:[%s3 + $0x38] sm:$0xf]
  %v666 = vld [vmem:[%s3 + $0x3c] sm:$0xf]
  %v667 = vld [vmem:[%s3 + $0x40] sm:$0xf]
  %v668 = vld [vmem:[%s3 + $0x44] sm:$0xf]
  %v669 = vld [vmem:[%s3 + $0x48] sm:$0xf]
  %v670 = vld [vmem:[%s3 + $0x4c] sm:$0xf]
  %v671 = vld [vmem:[%s3 + $0x50] sm:$0xf]
  %v672 = vld [vmem:[%s3 + $0x54] sm:$0xf]
  %v673 = vld [vmem:[%s3 + $0x58] sm:$0xf]
  %v674 = vld [vmem:[%s3 + $0x5c] sm:$0xf]
  %v675 = vld [vmem:[%s3 + $0x60] sm:$0xf]
  %v676 = vld [vmem:[%s3 + $0x64] sm:$0xf]
  %v677 = vld [vmem:[%s3 + $0x68] sm:$0xf]
  %v678 = vld [vmem:[%s3 + $0x6c] sm:$0xf]
  %v679 = vld [vmem:[%s3 + $0x70] sm:$0xf]
  %v680 = vld [vmem:[%s3 + $0x74] sm:$0xf]
  %v681 = vld [vmem:[%s3 + $0x78] sm:$0xf]
  %v682 = vld [vmem:[%s3 + $0x7c] sm:$0xf]
  %v715 = vunpack.c.l.b16 %v651
  %v716 = vunpack.c.l.b16 %v652
  %v717 = vunpack.c.l.b16 %v653
  %v718 = vunpack.c.l.b16 %v654
  %v719 = vunpack.c.l.b16 %v655
  %v720 = vunpack.c.l.b16 %v656
  %v721 = vunpack.c.l.b16 %v657
  %v722 = vunpack.c.l.b16 %v658
  %v723 = vunpack.c.l.b16 %v659
  %v724 = vunpack.c.l.b16 %v660
  %v725 = vunpack.c.l.b16 %v661
  %v726 = vunpack.c.l.b16 %v662
  %v727 = vunpack.c.l.b16 %v663
  %v728 = vunpack.c.l.b16 %v664
  %v729 = vunpack.c.l.b16 %v665
  %v730 = vunpack.c.l.b16 %v666
  %v731 = vunpack.c.l.b16 %v667
  %v732 = vunpack.c.l.b16 %v668
  %v733 = vunpack.c.l.b16 %v669
  %v734 = vunpack.c.l.b16 %v670
  %v735 = vunpack.c.l.b16 %v671
  %v736 = vunpack.c.l.b16 %v672
  %v737 = vunpack.c.l.b16 %v673
  %v738 = vunpack.c.l.b16 %v674
  %v739 = vunpack.c.l.b16 %v675
  %v740 = vunpack.c.l.b16 %v676
  %v741 = vunpack.c.l.b16 %v677
  %v742 = vunpack.c.l.b16 %v678
  %v743 = vunpack.c.l.b16 %v679
  %v744 = vunpack.c.l.b16 %v680
  %v745 = vunpack.c.l.b16 %v681
  %v746 = vunpack.c.l.b16 %v682
  %v747 = vpack.c.b16 %v716, %v715
  %v748 = vpack.c.b16 %v718, %v717
  %v749 = vpack.c.b16 %v720, %v719
  %v750 = vpack.c.b16 %v722, %v721
  %v751 = vpack.c.b16 %v724, %v723
  %v752 = vpack.c.b16 %v726, %v725
  %v753 = vpack.c.b16 %v728, %v727
  %v754 = vpack.c.b16 %v730, %v729
  %v755 = vpack.c.b16 %v732, %v731
  %v756 = vpack.c.b16 %v734, %v733
  %v757 = vpack.c.b16 %v736, %v735
  %v758 = vpack.c.b16 %v738, %v737
  %v759 = vpack.c.b16 %v740, %v739
  %v760 = vpack.c.b16 %v742, %v741
  %v761 = vpack.c.b16 %v744, %v743
  %v762 = vpack.c.b16 %v746, %v745
  %779 = vmatprep.subr.bf16.mxu0 0
  %780 = vmatpush1.bf16.msra.mxu0 %v747
  %781 = vmatprep.subr.bf16.mxu0 0
  %782 = vmatpush1.bf16.msra.mxu0 %v748
  %783 = vmatprep.subr.bf16.mxu0 0
  %784 = vmatpush1.bf16.msra.mxu0 %v749
  %785 = vmatprep.subr.bf16.mxu0 0
  %786 = vmatpush1.bf16.msra.mxu0 %v750
  %787 = vmatprep.subr.bf16.mxu0 0
  %788 = vmatpush1.bf16.msra.mxu0 %v751
  %789 = vmatprep.subr.bf16.mxu0 0
  %790 = vmatpush1.bf16.msra.mxu0 %v752
  %791 = vmatprep.subr.bf16.mxu0 0
  %792 = vmatpush1.bf16.msra.mxu0 %v753
  %793 = vmatprep.subr.bf16.mxu0 0
  %794 = vmatpush1.bf16.msra.mxu0 %v754
  %795 = vmatprep.subr.bf16.mxu0 0
  %796 = vmatpush1.bf16.msra.mxu0 %v755
  %797 = vmatprep.subr.bf16.mxu0 0
  %798 = vmatpush1.bf16.msra.mxu0 %v756
  %799 = vmatprep.subr.bf16.mxu0 0
  %800 = vmatpush1.bf16.msra.mxu0 %v757
  %801 = vmatprep.subr.bf16.mxu0 0
  %802 = vmatpush1.bf16.msra.mxu0 %v758
  %803 = vmatprep.subr.bf16.mxu0 0
  %804 = vmatpush1.bf16.msra.mxu0 %v759
  %805 = vmatprep.subr.bf16.mxu0 0
  %806 = vmatpush1.bf16.msra.mxu0 %v760
  %807 = vmatprep.subr.bf16.mxu0 0
  %808 = vmatpush1.bf16.msra.mxu0 %v761
  %809 = vmatprep.subr.bf16.mxu0 0
  %810 = vmatpush1.bf16.msra.mxu0 %v762
  %811 = vmatprep.mubr.bf16.mxu0 %v600
  %812 = vmatmul.mubr.bf16.gmra.mrb[0].mxu0 %v599
  %v813 = vpop.f32.mrb[0].mxu0
  %v814 = vadd.f32 0.0, %v813
  %v815 = vpop.f32.mrb[0].mxu0
  %v816 = vpop.f32.mrb[0].mxu0
  %v817 = vadd.f32 0.0, %v816
  %v818 = vpop.f32.mrb[0].mxu0
  %819 = vmatprep.mubr.bf16.mxu0 %v602
  %820 = vmatmul.mubr.bf16.gmra.mrb[0].mxu0 %v601
  %v821 = vpop.f32.mrb[0].mxu0
  %v822 = vadd.f32 0.0, %v821
  %v823 = vpop.f32.mrb[0].mxu0
  %v824 = vpop.f32.mrb[0].mxu0
  %v825 = vadd.f32 0.0, %v824
  %v826 = vpop.f32.mrb[0].mxu0
  %827 = vmatprep.mubr.bf16.mxu0 %v604
  %828 = vmatmul.mubr.bf16.gmra.mrb[0].mxu0 %v603
  %v829 = vpop.f32.mrb[0].mxu0
  %v830 = vadd.f32 0.0, %v829
  %v831 = vpop.f32.mrb[0].mxu0
  %v832 = vpop.f32.mrb[0].mxu0
  %v833 = vadd.f32 0.0, %v832
  %v834 = vpop.f32.mrb[0].mxu0
  %835 = vmatprep.mubr.bf16.mxu0 %v606
  %836 = vmatmul.mubr.bf16.gmra.mrb[0].mxu0 %v605
  %v837 = vpop.f32.mrb[0].mxu0
  %v838 = vadd.f32 0.0, %v837
  %v839 = vpop.f32.mrb[0].mxu0
  %v840 = vpop.f32.mrb[0].mxu0
  %v841 = vadd.f32 0.0, %v840
  %v842 = vpop.f32.mrb[0].mxu0
  %843 = vmatprep.mubr.bf16.mxu0 %v608
  %844 = vmatmul.mubr.bf16.gmra.mrb[0].mxu0 %v607
  %v845 = vpop.f32.mrb[0].mxu0
  %v846 = vadd.f32 0.0, %v845
  %v847 = vpop.f32.mrb[0].mxu0
  %v848 = vpop.f32.mrb[0].mxu0
  %v849 = vadd.f32 0.0, %v848
  %v850 = vpop.f32.mrb[0].mxu0
  %851 = vmatprep.mubr.bf16.mxu0 %v610
  %852 = vmatmul.mubr.bf16.gmra.mrb[0].mxu0 %v609
  %v853 = vpop.f32.mrb[0].mxu0
  %v854 = vadd.f32 0.0, %v853
  %v855 = vpop.f32.mrb[0].mxu0
  %v856 = vpop.f32.mrb[0].mxu0
  %v857 = vadd.f32 0.0, %v856
  %v858 = vpop.f32.mrb[0].mxu0
  %859 = vmatprep.mubr.bf16.mxu0 %v612
  %860 = vmatmul.mubr.bf16.gmra.mrb[0].mxu0 %v611
  %v861 = vpop.f32.mrb[0].mxu0
  %v862 = vadd.f32 0.0, %v861
  %v863 = vpop.f32.mrb[0].mxu0
  %v864 = vpop.f32.mrb[0].mxu0
  %v865 = vadd.f32 0.0, %v864
  %v866 = vpop.f32.mrb[0].mxu0
  %867 = vmatprep.mubr.bf16.mxu0 %v614
  %868 = vmatmul.mubr.bf16.gmra.mrb[0].mxu0 %v613
  %v869 = vpop.f32.mrb[0].mxu0
  %v870 = vadd.f32 0.0, %v869
  %v871 = vpop.f32.mrb[0].mxu0
  %v872 = vpop.f32.mrb[0].mxu0
  %v873 = vadd.f32 0.0, %v872
  %v874 = vpop.f32.mrb[0].mxu0
  %875 = vmatprep.mubr.bf16.mxu0 %v616
  %876 = vmatmul.mubr.bf16.gmra.mrb[0].mxu0 %v615
  %v877 = vpop.f32.mrb[0].mxu0
  %v878 = vadd.f32 0.0, %v877
  %v879 = vpop.f32.mrb[0].mxu0
  %v880 = vpop.f32.mrb[0].mxu0
  %v881 = vadd.f32 0.0, %v880
  %v882 = vpop.f32.mrb[0].mxu0
  %883 = vmatprep.mubr.bf16.mxu0 %v618
  %884 = vmatmul.mubr.bf16.gmra.mrb[0].mxu0 %v617
  %v885 = vpop.f32.mrb[0].mxu0
  %v886 = vadd.f32 0.0, %v885
  %v887 = vpop.f32.mrb[0].mxu0
  %v888 = vpop.f32.mrb[0].mxu0
  %v889 = vadd.f32 0.0, %v888
  %v890 = vpop.f32.mrb[0].mxu0
  %891 = vmatprep.mubr.bf16.mxu0 %v620
  %892 = vmatmul.mubr.bf16.gmra.mrb[0].mxu0 %v619
  %v893 = vpop.f32.mrb[0].mxu0
  %v894 = vadd.f32 0.0, %v893
  %v895 = vpop.f32.mrb[0].mxu0
  %v896 = vpop.f32.mrb[0].mxu0
  %v897 = vadd.f32 0.0, %v896
  %v898 = vpop.f32.mrb[0].mxu0
  %899 = vmatprep.mubr.bf16.mxu0 %v622
  %900 = vmatmul.mubr.bf16.gmra.mrb[0].mxu0 %v621
  %v901 = vpop.f32.mrb[0].mxu0
  %v902 = vadd.f32 0.0, %v901
  %v903 = vpop.f32.mrb[0].mxu0
  %v904 = vpop.f32.mrb[0].mxu0
  %v905 = vadd.f32 0.0, %v904
  %v906 = vpop.f32.mrb[0].mxu0
  %907 = vmatprep.mubr.bf16.mxu0 %v624
  %908 = vmatmul.mubr.bf16.gmra.mrb[0].mxu0 %v623
  %v909 = vpop.f32.mrb[0].mxu0
  %v910 = vadd.f32 0.0, %v909
  %v911 = vpop.f32.mrb[0].mxu0
  %v912 = vpop.f32.mrb[0].mxu0
  %v913 = vadd.f32 0.0, %v912
  %v914 = vpop.f32.mrb[0].mxu0
  %915 = vmatprep.mubr.bf16.mxu0 %v626
  %916 = vmatmul.mubr.bf16.gmra.mrb[0].mxu0 %v625
  %v917 = vpop.f32.mrb[0].mxu0
  %v918 = vadd.f32 0.0, %v917
  %v919 = vpop.f32.mrb[0].mxu0
  %v920 = vpop.f32.mrb[0].mxu0
  %v921 = vadd.f32 0.0, %v920
  %v922 = vpop.f32.mrb[0].mxu0
  %923 = vmatprep.mubr.bf16.mxu0 %v628
  %924 = vmatmul.mubr.bf16.gmra.mrb[0].mxu0 %v627
  %v925 = vpop.f32.mrb[0].mxu0
  %v926 = vadd.f32 0.0, %v925
  %v927 = vpop.f32.mrb[0].mxu0
  %v928 = vpop.f32.mrb[0].mxu0
  %v929 = vadd.f32 0.0, %v928
  %v930 = vpop.f32.mrb[0].mxu0
  %931 = vmatprep.mubr.bf16.mxu0 %v630
  %932 = vmatmul.mubr.bf16.gmra.mrb[0].mxu0 %v629
  %v933 = vpop.f32.mrb[0].mxu0
  %v934 = vadd.f32 0.0, %v933
  %v935 = vpop.f32.mrb[0].mxu0
  %v936 = vpop.f32.mrb[0].mxu0
  %v937 = vadd.f32 0.0, %v936
  %v938 = vpop.f32.mrb[0].mxu0
  %939 = vmatprep.mubr.bf16.mxu0 %v632
  %940 = vmatmul.mubr.bf16.gmra.mrb[0].mxu0 %v631
  %v941 = vpop.f32.mrb[0].mxu0
  %v942 = vadd.f32 0.0, %v941
  %v943 = vpop.f32.mrb[0].mxu0
  %v944 = vpop.f32.mrb[0].mxu0
  %v945 = vadd.f32 0.0, %v944
  %v946 = vpop.f32.mrb[0].mxu0
  %947 = vmatprep.mubr.bf16.mxu0 %v634
  %948 = vmatmul.mubr.bf16.gmra.mrb[0].mxu0 %v633
  %v949 = vpop.f32.mrb[0].mxu0
  %v950 = vadd.f32 0.0, %v949
  %v951 = vpop.f32.mrb[0].mxu0
  %v952 = vpop.f32.mrb[0].mxu0
  %v953 = vadd.f32 0.0, %v952
  %v954 = vpop.f32.mrb[0].mxu0
  %955 = vmatprep.mubr.bf16.mxu0 %v636
  %956 = vmatmul.mubr.bf16.gmra.mrb[0].mxu0 %v635
  %v957 = vpop.f32.mrb[0].mxu0
  %v958 = vadd.f32 0.0, %v957
  %v959 = vpop.f32.mrb[0].mxu0
  %v960 = vpop.f32.mrb[0].mxu0
  %v961 = vadd.f32 0.0, %v960
  %v962 = vpop.f32.mrb[0].mxu0
  %963 = vmatprep.mubr.bf16.mxu0 %v638
  %964 = vmatmul.mubr.bf16.gmra.mrb[0].mxu0 %v637
  %v965 = vpop.f32.mrb[0].mxu0
  %v966 = vadd.f32 0.0, %v965
  %v967 = vpop.f32.mrb[0].mxu0
  %v968 = vpop.f32.mrb[0].mxu0
  %v969 = vadd.f32 0.0, %v968
  %v970 = vpop.f32.mrb[0].mxu0
  %971 = vmatprep.mubr.bf16.mxu0 %v640
  %972 = vmatmul.mubr.bf16.gmra.mrb[0].mxu0 %v639
  %v973 = vpop.f32.mrb[0].mxu0
  %v974 = vadd.f32 0.0, %v973
  %v975 = vpop.f32.mrb[0].mxu0
  %v976 = vpop.f32.mrb[0].mxu0
  %v977 = vadd.f32 0.0, %v976
  %v978 = vpop.f32.mrb[0].mxu0
  %979 = vmatprep.mubr.bf16.mxu0 %v642
  %980 = vmatmul.mubr.bf16.gmra.mrb[0].mxu0 %v641
  %v981 = vpop.f32.mrb[0].mxu0
  %v982 = vadd.f32 0.0, %v981
  %v983 = vpop.f32.mrb[0].mxu0
  %v984 = vpop.f32.mrb[0].mxu0
  %v985 = vadd.f32 0.0, %v984
  %v986 = vpop.f32.mrb[0].mxu0
  %987 = vmatprep.mubr.bf16.mxu0 %v644
  %988 = vmatmul.mubr.bf16.gmra.mrb[0].mxu0 %v643
  %v989 = vpop.f32.mrb[0].mxu0
  %v990 = vadd.f32 0.0, %v989
  %v991 = vpop.f32.mrb[0].mxu0
  %v992 = vpop.f32.mrb[0].mxu0
  %v993 = vadd.f32 0.0, %v992
  %v994 = vpop.f32.mrb[0].mxu0
  %995 = vmatprep.mubr.bf16.mxu0 %v646
  %996 = vmatmul.mubr.bf16.gmra.mrb[0].mxu0 %v645
  %v997 = vpop.f32.mrb[0].mxu0
  %v998 = vadd.f32 0.0, %v997
  %v999 = vpop.f32.mrb[0].mxu0
  %v1000 = vpop.f32.mrb[0].mxu0
  %v1001 = vadd.f32 0.0, %v1000
  %v1002 = vpop.f32.mrb[0].mxu0
  %1003 = vmatprep.mubr.bf16.mxu0 %v648
  %1004 = vmatmul.mubr.bf16.gmra.mrb[0].mxu0 %v647
  %v1005 = vpop.f32.mrb[0].mxu0
  %v1006 = vadd.f32 0.0, %v1005
  %v1007 = vpop.f32.mrb[0].mxu0
  %v1008 = vpop.f32.mrb[0].mxu0
  %v1009 = vadd.f32 0.0, %v1008
  %v1010 = vpop.f32.mrb[0].mxu0
  %1011 = vmatprep.mubr.bf16.mxu0 %v650
  %1012 = vmatmul.mubr.bf16.gmra.mrb[0].mxu0 %v649
  %v1013 = vpop.f32.mrb[0].mxu0
  %v1014 = vadd.f32 0.0, %v1013
  %v1015 = vpop.f32.mrb[0].mxu0
  %v1016 = vpop.f32.mrb[0].mxu0
  %v1017 = vpop.f32.mrb[0].mxu0
  %1018 = vdwg.mxu0
  %p1019 = scmp.eq.s32.totalorder 0, 0
  // Predicated region
  $region22: #{position_wise_feed_forward.1} parent=0 // pred_check
    %p1020 = pneg %p1019
  $region23: #{position_wise_feed_forward.1} parent=0 // pred_check_branch
    %1022 = sbr.rel (%p1020) target = $region25
  $region24: #{position_wise_feed_forward.1} parent=0 // pred_region
    %v1023 = vld [vmem:[%s4] sm:$0x1]
    %v1025 = vlaneseq
    %v1026 = vshrl.u32 %v1025, 7
    %v1027 = vsub.s32 0, %v1026
    %v1028 = vrot.slane %v1023, %v1027
    %v1030 = vadd.f32 %v814, %v1028
    %v1031 = vadd.f32 %v817, %v1028
    %v1032 = vadd.f32 %v822, %v1028
    %v1033 = vadd.f32 %v825, %v1028
    %v1034 = vadd.f32 %v830, %v1028
    %v1035 = vadd.f32 %v833, %v1028
    %v1036 = vadd.f32 %v838, %v1028
    %v1037 = vadd.f32 %v841, %v1028
    %v1038 = vadd.f32 %v846, %v1028
    %v1039 = vadd.f32 %v849, %v1028
    %v1040 = vadd.f32 %v854, %v1028
    %v1041 = vadd.f32 %v857, %v1028
    %v1042 = vadd.f32 %v862, %v1028
    %v1043 = vadd.f32 %v865, %v1028
    %v1044 = vadd.f32 %v870, %v1028
    %v1045 = vadd.f32 %v873, %v1028
    %v1046 = vadd.f32 %v878, %v1028
    %v1047 = vadd.f32 %v881, %v1028
    %v1048 = vadd.f32 %v886, %v1028
    %v1049 = vadd.f32 %v889, %v1028
    %v1050 = vadd.f32 %v894, %v1028
    %v1051 = vadd.f32 %v897, %v1028
    %v1052 = vadd.f32 %v902, %v1028
    %v1053 = vadd.f32 %v905, %v1028
    %v1054 = vadd.f32 %v910, %v1028
    %v1055 = vadd.f32 %v913, %v1028
    %v1056 = vadd.f32 %v918, %v1028
    %v1057 = vadd.f32 %v921, %v1028
    %v1058 = vadd.f32 %v926, %v1028
    %v1059 = vadd.f32 %v929, %v1028
    %v1060 = vadd.f32 %v934, %v1028
    %v1061 = vadd.f32 %v937, %v1028
    %v1062 = vadd.f32 %v942, %v1028
    %v1063 = vadd.f32 %v945, %v1028
    %v1064 = vadd.f32 %v950, %v1028
    %v1065 = vadd.f32 %v953, %v1028
    %v1066 = vadd.f32 %v958, %v1028
    %v1067 = vadd.f32 %v961, %v1028
    %v1068 = vadd.f32 %v966, %v1028
    %v1069 = vadd.f32 %v969, %v1028
    %v1070 = vadd.f32 %v974, %v1028
    %v1071 = vadd.f32 %v977, %v1028
    %v1072 = vadd.f32 %v982, %v1028
    %v1073 = vadd.f32 %v985, %v1028
    %v1074 = vadd.f32 %v990, %v1028
    %v1075 = vadd.f32 %v993, %v1028
    %v1076 = vadd.f32 %v998, %v1028
    %v1077 = vadd.f32 %v1001, %v1028
    %v1078 = vadd.f32 %v1006, %v1028
    %v1079 = vadd.f32 %v1009, %v1028
    %v1080 = vadd.f32 %v1014, %v1028
    %1081 = vst [vmem:[%s5] sm:$0xff] %v1030
    %1082 = vst [vmem:[%s5 + $0x8] sm:$0xff] %v1031
    %1083 = vst [vmem:[%s5 + $0x10] sm:$0xff] %v1032
    %1084 = vst [vmem:[%s5 + $0x18] sm:$0xff] %v1033
    %1085 = vst [vmem:[%s5 + $0x20] sm:$0xff] %v1034
    %1086 = vst [vmem:[%s5 + $0x28] sm:$0xff] %v1035
    %1087 = vst [vmem:[%s5 + $0x30] sm:$0xff] %v1036
    %1088 = vst [vmem:[%s5 + $0x38] sm:$0xff] %v1037
    %1089 = vst [vmem:[%s5 + $0x40] sm:$0xff] %v1038
    %1090 = vst [vmem:[%s5 + $0x48] sm:$0xff] %v1039
    %1091 = vst [vmem:[%s5 + $0x50] sm:$0xff] %v1040
    %1092 = vst [vmem:[%s5 + $0x58] sm:$0xff] %v1041
    %1093 = vst [vmem:[%s5 + $0x60] sm:$0xff] %v1042
    %1094 = vst [vmem:[%s5 + $0x68] sm:$0xff] %v1043
    %1095 = vst [vmem:[%s5 + $0x70] sm:$0xff] %v1044
    %1096 = vst [vmem:[%s5 + $0x78] sm:$0xff] %v1045
    %1097 = vst [vmem:[%s5 + $0x80] sm:$0xff] %v1046
    %1098 = vst [vmem:[%s5 + $0x88] sm:$0xff] %v1047
    %1099 = vst [vmem:[%s5 + $0x90] sm:$0xff] %v1048
    %1100 = vst [vmem:[%s5 + $0x98] sm:$0xff] %v1049
    %1101 = vst [vmem:[%s5 + $0xa0] sm:$0xff] %v1050
    %1102 = vst [vmem:[%s5 + $0xa8] sm:$0xff] %v1051
    %1103 = vst [vmem:[%s5 + $0xb0] sm:$0xff] %v1052
    %1104 = vst [vmem:[%s5 + $0xb8] sm:$0xff] %v1053
    %1105 = vst [vmem:[%s5 + $0xc0] sm:$0xff] %v1054
    %1106 = vst [vmem:[%s5 + $0xc8] sm:$0xff] %v1055
    %1107 = vst [vmem:[%s5 + $0xd0] sm:$0xff] %v1056
    %1108 = vst [vmem:[%s5 + $0xd8] sm:$0xff] %v1057
    %1109 = vst [vmem:[%s5 + $0xe0] sm:$0xff] %v1058
    %1110 = vst [vmem:[%s5 + $0xe8] sm:$0xff] %v1059
    %1111 = vst [vmem:[%s5 + $0xf0] sm:$0xff] %v1060
    %1112 = vst [vmem:[%s5 + $0xf8] sm:$0xff] %v1061
    %1113 = vst [vmem:[%s5 + $0x100] sm:$0xff] %v1062
    %1114 = vst [vmem:[%s5 + $0x108] sm:$0xff] %v1063
    %1115 = vst [vmem:[%s5 + $0x110] sm:$0xff] %v1064
    %1116 = vst [vmem:[%s5 + $0x118] sm:$0xff] %v1065
    %1117 = vst [vmem:[%s5 + $0x120] sm:$0xff] %v1066
    %1118 = vst [vmem:[%s5 + $0x128] sm:$0xff] %v1067
    %1119 = vst [vmem:[%s5 + $0x130] sm:$0xff] %v1068
    %1120 = vst [vmem:[%s5 + $0x138] sm:$0xff] %v1069
    %1121 = vst [vmem:[%s5 + $0x140] sm:$0xff] %v1070
    %1122 = vst [vmem:[%s5 + $0x148] sm:$0xff] %v1071
    %1123 = vst [vmem:[%s5 + $0x150] sm:$0xff] %v1072
    %1124 = vst [vmem:[%s5 + $0x158] sm:$0xff] %v1073
    %1125 = vst [vmem:[%s5 + $0x160] sm:$0xff] %v1074
    %1126 = vst [vmem:[%s5 + $0x168] sm:$0xff] %v1075
    %1127 = vst [vmem:[%s5 + $0x170] sm:$0xff] %v1076
    %1128 = vst [vmem:[%s5 + $0x178] sm:$0xff] %v1077
    %1129 = vst [vmem:[%s5 + $0x180] sm:$0xff] %v1078
    %1130 = vst [vmem:[%s5 + $0x188] sm:$0xff] %v1079
    %1131 = vst [vmem:[%s5 + $0x190] sm:$0xff] %v1080
  $region25: #{position_wise_feed_forward.1} parent=0 // pred_fallthru
    _
  %p1132 = scmp.gt.s32.totalorder 0, 0
  // Predicated region
  $region26: #{position_wise_feed_forward.1} parent=0 // pred_check
    %p1133 = pneg %p1132
  $region27: #{position_wise_feed_forward.1} parent=0 // pred_check_branch
    %1135 = sbr.rel (%p1133) target = $region29
  $region28: #{position_wise_feed_forward.1} parent=0 // pred_region
    %v1136 = vld [vmem:[%s5] sm:$0xff]
    %v1137 = vld [vmem:[%s5 + $0x8] sm:$0xff]
    %v1138 = vld [vmem:[%s5 + $0x10] sm:$0xff]
    %v1139 = vld [vmem:[%s5 + $0x18] sm:$0xff]
    %v1140 = vld [vmem:[%s5 + $0x20] sm:$0xff]
    %v1141 = vld [vmem:[%s5 + $0x28] sm:$0xff]
    %v1142 = vld [vmem:[%s5 + $0x30] sm:$0xff]
    %v1143 = vld [vmem:[%s5 + $0x38] sm:$0xff]
    %v1144 = vld [vmem:[%s5 + $0x40] sm:$0xff]
    %v1145 = vld [vmem:[%s5 + $0x48] sm:$0xff]
    %v1146 = vld [vmem:[%s5 + $0x50] sm:$0xff]
    %v1147 = vld [vmem:[%s5 + $0x58] sm:$0xff]
    %v1148 = vld [vmem:[%s5 + $0x60] sm:$0xff]
    %v1149 = vld [vmem:[%s5 + $0x68] sm:$0xff]
    %v1150 = vld [vmem:[%s5 + $0x70] sm:$0xff]
    %v1151 = vld [vmem:[%s5 + $0x78] sm:$0xff]
    %v1152 = vld [vmem:[%s5 + $0x80] sm:$0xff]
    %v1153 = vld [vmem:[%s5 + $0x88] sm:$0xff]
    %v1154 = vld [vmem:[%s5 + $0x90] sm:$0xff]
    %v1155 = vld [vmem:[%s5 + $0x98] sm:$0xff]
    %v1156 = vld [vmem:[%s5 + $0xa0] sm:$0xff]
    %v1157 = vld [vmem:[%s5 + $0xa8] sm:$0xff]
    %v1158 = vld [vmem:[%s5 + $0xb0] sm:$0xff]
    %v1159 = vld [vmem:[%s5 + $0xb8] sm:$0xff]
    %v1160 = vld [vmem:[%s5 + $0xc0] sm:$0xff]
    %v1161 = vld [vmem:[%s5 + $0xc8] sm:$0xff]
    %v1162 = vld [vmem:[%s5 + $0xd0] sm:$0xff]
    %v1163 = vld [vmem:[%s5 + $0xd8] sm:$0xff]
    %v1164 = vld [vmem:[%s5 + $0xe0] sm:$0xff]
    %v1165 = vld [vmem:[%s5 + $0xe8] sm:$0xff]
    %v1166 = vld [vmem:[%s5 + $0xf0] sm:$0xff]
    %v1167 = vld [vmem:[%s5 + $0xf8] sm:$0xff]
    %v1168 = vld [vmem:[%s5 + $0x100] sm:$0xff]
    %v1169 = vld [vmem:[%s5 + $0x108] sm:$0xff]
    %v1170 = vld [vmem:[%s5 + $0x110] sm:$0xff]
    %v1171 = vld [vmem:[%s5 + $0x118] sm:$0xff]
    %v1172 = vld [vmem:[%s5 + $0x120] sm:$0xff]
    %v1173 = vld [vmem:[%s5 + $0x128] sm:$0xff]
    %v1174 = vld [vmem:[%s5 + $0x130] sm:$0xff]
    %v1175 = vld [vmem:[%s5 + $0x138] sm:$0xff]
    %v1176 = vld [vmem:[%s5 + $0x140] sm:$0xff]
    %v1177 = vld [vmem:[%s5 + $0x148] sm:$0xff]
    %v1178 = vld [vmem:[%s5 + $0x150] sm:$0xff]
    %v1179 = vld [vmem:[%s5 + $0x158] sm:$0xff]
    %v1180 = vld [vmem:[%s5 + $0x160] sm:$0xff]
    %v1181 = vld [vmem:[%s5 + $0x168] sm:$0xff]
    %v1182 = vld [vmem:[%s5 + $0x170] sm:$0xff]
    %v1183 = vld [vmem:[%s5 + $0x178] sm:$0xff]
    %v1184 = vld [vmem:[%s5 + $0x180] sm:$0xff]
    %v1185 = vld [vmem:[%s5 + $0x188] sm:$0xff]
    %v1186 = vld [vmem:[%s5 + $0x190] sm:$0xff]
    %v1187 = vadd.f32 %v1136, %v814
    %v1188 = vadd.f32 %v1137, %v817
    %v1189 = vadd.f32 %v1138, %v822
    %v1190 = vadd.f32 %v1139, %v825
    %v1191 = vadd.f32 %v1140, %v830
    %v1192 = vadd.f32 %v1141, %v833
    %v1193 = vadd.f32 %v1142, %v838
    %v1194 = vadd.f32 %v1143, %v841
    %v1195 = vadd.f32 %v1144, %v846
    %v1196 = vadd.f32 %v1145, %v849
    %v1197 = vadd.f32 %v1146, %v854
    %v1198 = vadd.f32 %v1147, %v857
    %v1199 = vadd.f32 %v1148, %v862
    %v1200 = vadd.f32 %v1149, %v865
    %v1201 = vadd.f32 %v1150, %v870
    %v1202 = vadd.f32 %v1151, %v873
    %v1203 = vadd.f32 %v1152, %v878
    %v1204 = vadd.f32 %v1153, %v881
    %v1205 = vadd.f32 %v1154, %v886
    %v1206 = vadd.f32 %v1155, %v889
    %v1207 = vadd.f32 %v1156, %v894
    %v1208 = vadd.f32 %v1157, %v897
    %v1209 = vadd.f32 %v1158, %v902
    %v1210 = vadd.f32 %v1159, %v905
    %v1211 = vadd.f32 %v1160, %v910
    %v1212 = vadd.f32 %v1161, %v913
    %v1213 = vadd.f32 %v1162, %v918
    %v1214 = vadd.f32 %v1163, %v921
    %v1215 = vadd.f32 %v1164, %v926
    %v1216 = vadd.f32 %v1165, %v929
    %v1217 = vadd.f32 %v1166, %v934
    %v1218 = vadd.f32 %v1167, %v937
    %v1219 = vadd.f32 %v1168, %v942
    %v1220 = vadd.f32 %v1169, %v945
    %v1221 = vadd.f32 %v1170, %v950
    %v1222 = vadd.f32 %v1171, %v953
    %v1223 = vadd.f32 %v1172, %v958
    %v1224 = vadd.f32 %v1173, %v961
    %v1225 = vadd.f32 %v1174, %v966
    %v1226 = vadd.f32 %v1175, %v969
    %v1227 = vadd.f32 %v1176, %v974
    %v1228 = vadd.f32 %v1177, %v977
    %v1229 = vadd.f32 %v1178, %v982
    %v1230 = vadd.f32 %v1179, %v985
    %v1231 = vadd.f32 %v1180, %v990
    %v1232 = vadd.f32 %v1181, %v993
    %v1233 = vadd.f32 %v1182, %v998
    %v1234 = vadd.f32 %v1183, %v1001
    %v1235 = vadd.f32 %v1184, %v1006
    %v1236 = vadd.f32 %v1185, %v1009
    %v1237 = vadd.f32 %v1186, %v1014
    %1238 = vst [vmem:[%s5] sm:$0xff] %v1187
    %1239 = vst [vmem:[%s5 + $0x8] sm:$0xff] %v1188
    %1240 = vst [vmem:[%s5 + $0x10] sm:$0xff] %v1189
    %1241 = vst [vmem:[%s5 + $0x18] sm:$0xff] %v1190
    %1242 = vst [vmem:[%s5 + $0x20] sm:$0xff] %v1191
    %1243 = vst [vmem:[%s5 + $0x28] sm:$0xff] %v1192
    %1244 = vst [vmem:[%s5 + $0x30] sm:$0xff] %v1193
    %1245 = vst [vmem:[%s5 + $0x38] sm:$0xff] %v1194
    %1246 = vst [vmem:[%s5 + $0x40] sm:$0xff] %v1195
    %1247 = vst [vmem:[%s5 + $0x48] sm:$0xff] %v1196
    %1248 = vst [vmem:[%s5 + $0x50] sm:$0xff] %v1197
    %1249 = vst [vmem:[%s5 + $0x58] sm:$0xff] %v1198
    %1250 = vst [vmem:[%s5 + $0x60] sm:$0xff] %v1199
    %1251 = vst [vmem:[%s5 + $0x68] sm:$0xff] %v1200
    %1252 = vst [vmem:[%s5 + $0x70] sm:$0xff] %v1201
    %1253 = vst [vmem:[%s5 + $0x78] sm:$0xff] %v1202
    %1254 = vst [vmem:[%s5 + $0x80] sm:$0xff] %v1203
    %1255 = vst [vmem:[%s5 + $0x88] sm:$0xff] %v1204
    %1256 = vst [vmem:[%s5 + $0x90] sm:$0xff] %v1205
    %1257 = vst [vmem:[%s5 + $0x98] sm:$0xff] %v1206
    %1258 = vst [vmem:[%s5 + $0xa0] sm:$0xff] %v1207
    %1259 = vst [vmem:[%s5 + $0xa8] sm:$0xff] %v1208
    %1260 = vst [vmem:[%s5 + $0xb0] sm:$0xff] %v1209
    %1261 = vst [vmem:[%s5 + $0xb8] sm:$0xff] %v1210
    %1262 = vst [vmem:[%s5 + $0xc0] sm:$0xff] %v1211
    %1263 = vst [vmem:[%s5 + $0xc8] sm:$0xff] %v1212
    %1264 = vst [vmem:[%s5 + $0xd0] sm:$0xff] %v1213
    %1265 = vst [vmem:[%s5 + $0xd8] sm:$0xff] %v1214
    %1266 = vst [vmem:[%s5 + $0xe0] sm:$0xff] %v1215
    %1267 = vst [vmem:[%s5 + $0xe8] sm:$0xff] %v1216
    %1268 = vst [vmem:[%s5 + $0xf0] sm:$0xff] %v1217
    %1269 = vst [vmem:[%s5 + $0xf8] sm:$0xff] %v1218
    %1270 = vst [vmem:[%s5 + $0x100] sm:$0xff] %v1219
    %1271 = vst [vmem:[%s5 + $0x108] sm:$0xff] %v1220
    %1272 = vst [vmem:[%s5 + $0x110] sm:$0xff] %v1221
    %1273 = vst [vmem:[%s5 + $0x118] sm:$0xff] %v1222
    %1274 = vst [vmem:[%s5 + $0x120] sm:$0xff] %v1223
    %1275 = vst [vmem:[%s5 + $0x128] sm:$0xff] %v1224
    %1276 = vst [vmem:[%s5 + $0x130] sm:$0xff] %v1225
    %1277 = vst [vmem:[%s5 + $0x138] sm:$0xff] %v1226
    %1278 = vst [vmem:[%s5 + $0x140] sm:$0xff] %v1227
    %1279 = vst [vmem:[%s5 + $0x148] sm:$0xff] %v1228
    %1280 = vst [vmem:[%s5 + $0x150] sm:$0xff] %v1229
    %1281 = vst [vmem:[%s5 + $0x158] sm:$0xff] %v1230
    %1282 = vst [vmem:[%s5 + $0x160] sm:$0xff] %v1231
    %1283 = vst [vmem:[%s5 + $0x168] sm:$0xff] %v1232
    %1284 = vst [vmem:[%s5 + $0x170] sm:$0xff] %v1233
    %1285 = vst [vmem:[%s5 + $0x178] sm:$0xff] %v1234
    %1286 = vst [vmem:[%s5 + $0x180] sm:$0xff] %v1235
    %1287 = vst [vmem:[%s5 + $0x188] sm:$0xff] %v1236
    %1288 = vst [vmem:[%s5 + $0x190] sm:$0xff] %v1237
  $region29: #{position_wise_feed_forward.1} parent=0 // pred_fallthru
    _
  // Predicated region
  $region30: #{position_wise_feed_forward.1} parent=0 // pred_check
    _
  $region31: #{position_wise_feed_forward.1} parent=0 // pred_check_branch
    %1290 = sbr.rel (0) target = $region33
  $region32: #{position_wise_feed_forward.1} parent=0 // pred_region
    _
  $region33: #{position_wise_feed_forward.1} parent=0 // pred_fallthru
    _
  // Predicated region
  $region34: #{position_wise_feed_forward.1} parent=0 // pred_check
    _
  $region35: #{position_wise_feed_forward.1} parent=0 // pred_check_branch
    %1292 = sbr.rel (0) target = $region37
  $region36: #{position_wise_feed_forward.1} parent=0 // pred_region
    _
  $region37: #{position_wise_feed_forward.1} parent=0 // pred_fallthru
    _

</llo_original>
